<compile_context>
chip_gen: v6e
topology: v6e:2x2x1
jax: 0.10.0
libtpu: 0.0.40
codegen_flags: <defaults>
</compile_context>

<pallas_src>
import functools
import math

import jax
import jax.numpy as jnp
from jax import lax
from jax.experimental import pallas as pl
from jax.experimental.pallas import tpu as pltpu

_LANES = 128
_SUBLANES = 8
_PAD_LOGIT = -1e4  # pad logit (with target 0) yields an exactly-zero loss term


def _round_up(a, b):
    return ((a + b - 1) // b) * b


def _acf_kernel(x_ref, t_ref, out_ref, *, block_rows, chunk_rows, total_rows,
                margin, gamma, apply_relabel, relabel_thr, masked):
    """One grid step: process a (block_rows, 128) slab in chunk_rows-row chunks,
    accumulating an (8, 128) partial sum that lives in vregs the whole time."""
    num_chunks = block_rows // chunk_rows

    if masked:
        # Only the (statically known) ragged last block really needs this; on
        # interior blocks the compare is all-true.  Iota is hoisted out of the loop.
        valid_rows = jnp.minimum(
            jnp.int32(total_rows) - pl.program_id(0) * block_rows,
            jnp.int32(block_rows))
        row_iota = lax.broadcasted_iota(jnp.int32, (chunk_rows, _LANES), 0)

    g = float(gamma)

    def chunk_loss(x, t):
        # x, t: (chunk_rows, 128) f32.  Exploits binary targets (t in {0, 1}).
        x = x - margin * t                            # == where(t == 1, x - margin, x)
        e = jnp.exp(-jnp.abs(x))                      # EUP
        log1pe = jnp.log1p(e)                         # EUP
        inv = pl.reciprocal(1.0 + e, approx=True)     # EUP (approx reciprocal)
        sig = jnp.where(x >= 0.0, inv, e * inv)       # sigmoid(x)
        log_sig_pos = jnp.minimum(x, 0.0) - log1pe    # log sigmoid(x)
        if apply_relabel:
            # sigmoid(x) > tau  <=>  x > logit(tau): exact threshold, independent
            # of the approximate reciprocal used for `sig` above.
            t = jnp.where(x > relabel_thr, 1.0, t)
        pt = sig + t * (1.0 - 2.0 * sig)              # == (1-sig)*t + sig*(1-t)
        if g.is_integer() and g >= 1.0:
            focal = pt
            for _ in range(int(g) - 1):               # gamma=3 -> pt*pt*pt (VPU only)
                focal = focal * pt
        elif g == 0.0:
            focal = jnp.ones_like(pt)
        else:
            focal = pt ** g                           # non-integer gamma fallback
        # -(t*logsig(x) + (1-t)*logsig(-x)) == x*(1-t) - logsig(x),
        # since logsig(-x) = logsig(x) - x.
        return (x * (1.0 - t) - log_sig_pos) * focal

    def body(i, acc):
        start = pl.multiple_of(i * chunk_rows, chunk_rows)
        x = x_ref[pl.ds(start, chunk_rows), :].astype(jnp.float32)  # cast in-kernel
        t = t_ref[pl.ds(start, chunk_rows), :].astype(jnp.float32)
        loss = chunk_loss(x, t)
        if masked:
            # Rows past the end of the array hold garbage (could be NaN/Inf after
            # the transcendentals) -- zero them before accumulating.
            loss = jnp.where(row_iota + i * chunk_rows < valid_rows, loss, 0.0)
        # Fold sublane-groups with VPU adds only; cross-lane reduce happens outside.
        partial = jnp.sum(
            loss.reshape(chunk_rows // _SUBLANES, _SUBLANES, _LANES), axis=0)
        return acc + partial

    acc = lax.fori_loop(0, num_chunks, body,
                        jnp.zeros((_SUBLANES, _LANES), jnp.float32))
    out_ref[0] = acc


def acf_loss(logits, targets, epoch, *, tau=0.8, change_epoch=1, margin=1.0,
             gamma=3.0, reduction="sum", block_rows=4096):
    """ACF forward pass.  `logits`/`targets` are passed in their native dtypes
    (e.g. bf16 logits, int8/bool labels for minimal HBM traffic) and cast inside
    the kernel.  Targets are assumed binarized (0/1), matching the module spec.
    `epoch` must be a concrete (host) value: the epoch >= change_epoch flag is
    resolved at trace time."""
    N, C = logits.shape
    total = N * C

    # Lane-dense view: (N, C) flattened to (rows, 128).  The reshapes are free;
    # a (small) pad copy happens only when N*C isn't a multiple of 128 or the
    # problem is tiny (< 32 rows, where we also force rows to a multiple of 8).
    padded_total = _round_up(total, _LANES)
    if padded_total < 32 * _LANES:
        padded_total = _round_up(padded_total, _SUBLANES * _LANES)
    x_flat = logits.reshape(-1)
    t_flat = targets.reshape(-1)
    pad = padded_total - total
    if pad:
        x_flat = jnp.pad(x_flat, (0, pad), constant_values=_PAD_LOGIT)
        t_flat = jnp.pad(t_flat, (0, pad), constant_values=0)
    rows = padded_total // _LANES
    x2 = x_flat.reshape(rows, _LANES)
    t2 = t_flat.reshape(rows, _LANES)

    # Block sizing: multiple of 32 (safe for f32/bf16/int32/int8 tiling), at least
    # 2 blocks when possible (v7x megacore), ragged last block handled in-kernel.
    if rows < 32:
        br = rows                                    # single full-extent block
    else:
        br = min(_round_up(block_rows, 32), (rows // 32) * 32)
        if rows >= 64:
            br = min(br, _round_up(pl.cdiv(rows, 2), 32))
    num_blocks = pl.cdiv(rows, br)
    masked = (rows % br) != 0

    if br % 64 == 0:
        chunk = 64                                   # 8 vregs per f32 temporary
    elif br % 32 == 0:
        chunk = 32
    else:
        chunk = br                                   # tiny problem: single chunk

    apply_relabel = bool(epoch >= change_epoch)      # static: baked at trace time
    if apply_relabel and tau >= 1.0:
        apply_relabel = False                        # sigmoid(x) > tau never holds
    if apply_relabel:
        thr = float("-inf") if tau <= 0.0 else math.log(tau / (1.0 - tau))
    else:
        thr = 0.0

    kernel = functools.partial(
        _acf_kernel, block_rows=br, chunk_rows=chunk, total_rows=rows,
        margin=float(margin), gamma=float(gamma),
        apply_relabel=apply_relabel, relabel_thr=float(thr), masked=masked)

    partials = pl.pallas_call(
        kernel,
        out_shape=jax.ShapeDtypeStruct((num_blocks, _SUBLANES, _LANES), jnp.float32),
        grid_spec=pltpu.PrefetchScalarGridSpec(
            num_scalar_prefetch=0,
            grid=(num_blocks,),
            in_specs=[
                pl.BlockSpec((br, _LANES), lambda i: (i, 0)),
                pl.BlockSpec((br, _LANES), lambda i: (i, 0)),
            ],
            out_specs=pl.BlockSpec((1, _SUBLANES, _LANES), lambda i: (i, 0, 0)),
        ),
        compiler_params=pltpu.CompilerParams(
            # Distinct output block per grid step -> safe to shard across
            # TensorCores (v7x megacore); harmless on single-TC v5e/v6e.
            dimension_semantics=("parallel",),
        ),
    )(x2, t2)

    total_loss = jnp.sum(partials)                   # tiny final reduce outside
    if reduction == "sum":
        return total_loss
    elif reduction == "mean":
        return total_loss / total
    else:
        # TODO(synk): 'none' reduction (elementwise (N, C) loss output) not wired up.
        raise NotImplementedError("reduction='none' not implemented")


def _log_sigmoid(x):
    # Numerically stable log(sigmoid(x)) = min(x, 0) - log1p(exp(-|x|))
    return jnp.minimum(x, 0.0) - jnp.log1p(jnp.exp(-jnp.abs(x)))


def _acf_reference(logits, targets, epoch, *, tau=0.8, change_epoch=1,
                   margin=1.0, gamma=3.0):
    # Mirrors the PyTorch ACF forward (reduction='sum').
    x = logits.astype(jnp.float32)
    t = targets.astype(jnp.float32)
    x = jnp.where(t == 1.0, x - margin, x)
    if epoch >= change_epoch:
        t = jnp.where(jax.nn.sigmoid(x) > tau, 1.0, t)
    pred = jax.nn.sigmoid(x)
    pt = (1.0 - pred) * t + pred * (1.0 - t)
    focal_weight = pt ** gamma
    los_pos = t * _log_sigmoid(x)
    los_neg = (1.0 - t) * _log_sigmoid(-x)
    loss = -(los_pos + los_neg) * focal_weight
    return jnp.sum(loss)


if __name__ == "__main__":
    key = jax.random.PRNGKey(0)
    k1, k2, k3, k4 = jax.random.split(key, 4)

    # Small multi-label problem: 16 samples, 32 classes (f32 logits, int32 labels).
    N, C = 16, 32
    logits = jax.random.normal(k1, (N, C), dtype=jnp.float32) * 2.0
    targets = jax.random.bernoulli(k2, p=0.3, shape=(N, C)).astype(jnp.int32)

    # epoch >= change_epoch: relabel branch exercised.
    loss = jax.block_until_ready(acf_loss(logits, targets, epoch=2))
    ref = _acf_reference(logits, targets, epoch=2)
    assert jnp.allclose(loss, ref, rtol=1e-2, atol=1e-2), (loss, ref)

    # epoch < change_epoch: no-relabel (static-flag) path.
    loss0 = jax.block_until_ready(acf_loss(logits, targets, epoch=0))
    ref0 = _acf_reference(logits, targets, epoch=0)
    assert jnp.allclose(loss0, ref0, rtol=1e-2, atol=1e-2), (loss0, ref0)

    # Ragged / multi-block path with native low-precision inputs (bf16 logits,
    # int8 labels, cast in-kernel): rows=33 -> two 32-row blocks, the second
    # masked down to a single valid row.
    N2, C2 = 33, 128
    logits2 = (jax.random.normal(k3, (N2, C2), dtype=jnp.float32) * 2.0
               ).astype(jnp.bfloat16)
    targets2 = jax.random.bernoulli(k4, p=0.3, shape=(N2, C2)).astype(jnp.int8)
    loss2 = jax.block_until_ready(acf_loss(logits2, targets2, epoch=1))
    ref2 = _acf_reference(logits2, targets2, epoch=1)
    assert jnp.allclose(loss2, ref2, rtol=1e-2, atol=5e-2), (loss2, ref2)

    print("KERNEL_OK")
</pallas_src>

<mosaic_0001>
module attributes {stable_mosaic.version = 11 : i64} {
  func.func @_acf_kernel(%arg0: i32, %arg1: memref<8x128xf32, #tpu.memory_space<vmem>>, %arg2: memref<8x128xi32, #tpu.memory_space<vmem>>, %arg3: memref<1x8x128xf32, #tpu.memory_space<vmem>>) attributes {dimension_semantics = [#tpu.dimension_semantics<parallel>], iteration_bounds = array<i64: 1>, scalar_prefetch = 0 : i64, scratch_operands = 0 : i64, tpu.core_type = #tpu.core_type<tc>, window_params = [{transform_indices = @transform_0, window_bounds = array<i64: 8, 128>}, {transform_indices = @transform_1, window_bounds = array<i64: 8, 128>}, {transform_indices = @transform_2, window_bounds = array<i64: 1, 8, 128>}]} {
    %cst = arith.constant 0.000000e+00 : f32
    %0 = vector.broadcast %cst : f32 to vector<8x128xf32>
    %c0_i32 = arith.constant 0 : i32
    %c8_i32 = arith.constant 8 : i32
    %1 = arith.muli %c0_i32, %c8_i32 : i32
    %2 = tpu.assume_multiple %1, 8 : i32
    %3 = arith.index_cast %2 : i32 to index
    %c0 = arith.constant 0 : index
    %4 = vector.load %arg1[%3, %c0] : memref<8x128xf32, #tpu.memory_space<vmem>>, vector<8x128xf32>
    %5 = arith.index_cast %2 : i32 to index
    %c0_0 = arith.constant 0 : index
    %6 = vector.load %arg2[%5, %c0_0] : memref<8x128xi32, #tpu.memory_space<vmem>>, vector<8x128xi32>
    %7 = arith.sitofp %6 : vector<8x128xi32> to vector<8x128xf32>
    %cst_1 = arith.constant 1.000000e+00 : f32
    %8 = vector.broadcast %cst_1 : f32 to vector<8x128xf32>
    %9 = arith.mulf %8, %7 : vector<8x128xf32>
    %10 = arith.subf %4, %9 : vector<8x128xf32>
    %11 = math.absf %10 : vector<8x128xf32>
    %cst_2 = arith.constant 0.000000e+00 : f32
    %12 = vector.broadcast %cst_2 : f32 to vector<8x128xf32>
    %13 = arith.subf %12, %11 : vector<8x128xf32>
    %14 = math.exp %13 : vector<8x128xf32>
    %15 = math.log1p %14 : vector<8x128xf32>
    %cst_3 = arith.constant 1.000000e+00 : f32
    %16 = vector.broadcast %cst_3 : f32 to vector<8x128xf32>
    %17 = arith.addf %16, %14 : vector<8x128xf32>
    %18 = tpu.reciprocal %17 {approx = true} : vector<8x128xf32> -> vector<8x128xf32>
    %cst_4 = arith.constant 0.000000e+00 : f32
    %19 = vector.broadcast %cst_4 : f32 to vector<8x128xf32>
    %20 = arith.cmpf oge, %10, %19 : vector<8x128xf32>
    %21 = arith.mulf %14, %18 : vector<8x128xf32>
    %22 = arith.select %20, %18, %21 : vector<8x128xi1>, vector<8x128xf32>
    %cst_5 = arith.constant 0.000000e+00 : f32
    %23 = vector.broadcast %cst_5 : f32 to vector<8x128xf32>
    %24 = arith.minimumf %10, %23 : vector<8x128xf32>
    %25 = arith.subf %24, %15 : vector<8x128xf32>
    %cst_6 = arith.constant 1.38629436 : f32
    %26 = vector.broadcast %cst_6 : f32 to vector<8x128xf32>
    %27 = arith.cmpf ogt, %10, %26 : vector<8x128xf32>
    %cst_7 = arith.constant 1.000000e+00 : f32
    %28 = vector.broadcast %cst_7 : f32 to vector<8x128xf32>
    %29 = arith.select %27, %28, %7 : vector<8x128xi1>, vector<8x128xf32>
    %cst_8 = arith.constant 2.000000e+00 : f32
    %30 = vector.broadcast %cst_8 : f32 to vector<8x128xf32>
    %31 = arith.mulf %30, %22 : vector<8x128xf32>
    %cst_9 = arith.constant 1.000000e+00 : f32
    %32 = vector.broadcast %cst_9 : f32 to vector<8x128xf32>
    %33 = arith.subf %32, %31 : vector<8x128xf32>
    %34 = arith.mulf %29, %33 : vector<8x128xf32>
    %35 = arith.addf %22, %34 : vector<8x128xf32>
    %36 = arith.mulf %35, %35 : vector<8x128xf32>
    %37 = arith.mulf %36, %35 : vector<8x128xf32>
    %cst_10 = arith.constant 1.000000e+00 : f32
    %38 = vector.broadcast %cst_10 : f32 to vector<8x128xf32>
    %39 = arith.subf %38, %29 : vector<8x128xf32>
    %40 = arith.mulf %10, %39 : vector<8x128xf32>
    %41 = arith.subf %40, %25 : vector<8x128xf32>
    %42 = arith.mulf %41, %37 : vector<8x128xf32>
    %43 = vector.shape_cast %42 : vector<8x128xf32> to vector<1x8x128xf32>
    %cst_11 = arith.constant dense<0.000000e+00> : vector<8x128xf32>
    %44 = vector.multi_reduction <add>, %43, %cst_11 [0] : vector<1x8x128xf32> to vector<8x128xf32>
    %45 = arith.addf %0, %44 : vector<8x128xf32>
    %c1_i32 = arith.constant 1 : i32
    %c0_12 = arith.constant 0 : index
    %c0_13 = arith.constant 0 : index
    %c0_14 = arith.constant 0 : index
    %46 = vector.load %arg3[%c0_12, %c0_13, %c0_14] : memref<1x8x128xf32, #tpu.memory_space<vmem>>, vector<1x8x128xf32>
    %47 = vector.shape_cast %46 : vector<1x8x128xf32> to vector<8x128xf32>
    %48 = vector.shape_cast %45 : vector<8x128xf32> to vector<1x8x128xf32>
    tpu.vector_store %arg3[%c0_12, %c0_13, %c0_14], %48 {strides = array<i32>} : memref<1x8x128xf32, #tpu.memory_space<vmem>>, vector<1x8x128xf32>,
    return
  }
  func.func @transform_0(%arg0: i32) -> (i32, i32) {
    %c0_i32 = arith.constant 0 : i32
    %c0_i32_0 = arith.constant 0 : i32
    return %arg0, %c0_i32 : i32, i32
  }
  func.func @transform_1(%arg0: i32) -> (i32, i32) {
    %c0_i32 = arith.constant 0 : i32
    %c0_i32_0 = arith.constant 0 : i32
    return %arg0, %c0_i32 : i32, i32
  }
  func.func @transform_2(%arg0: i32) -> (i32, i32, i32) {
    %c0_i32 = arith.constant 0 : i32
    %c0_i32_0 = arith.constant 0 : i32
    %c0_i32_1 = arith.constant 0 : i32
    return %arg0, %c0_i32, %c0_i32_0 : i32, i32, i32
  }
}

</mosaic_0001>

<llo_original>
// kernel: tpu_custom_call.1
$region0: #{tpu_custom_call.1}
  #allocation0 [shape = 'u32[]', space=smem, size = 0x4, offset = 0x4, fixed_abs, tag = 'smem constant byte address 0x4 - core index']
  #allocation1 [shape = 'u32[144,128]{1,0:T(1,128)}', space=vmem, size = 0x12000, scoped, tag = 'internal scratch']
  %s0 = inlined_call_operand.hbm [shape: f32[8,128], index: 0, kind: input, shape index: {}]
  %s1 = inlined_call_operand.hbm [shape: s32[8,128], index: 1, kind: input, shape index: {}]
  %s2 = inlined_call_operand.hbm [shape: f32[1,8,128], index: 2, kind: output, shape index: {}]
  %s3 = sld [smem:[#allocation0]]
  $region26: #{tpu_custom_call.1} parent=0
    _
  %s5 = ssub.s32 1, %s3
  %s6 = scalar_select 0, %s5, %s3
  $region1: #{tpu_custom_call.1} parent=0
    #allocation2 [shape = 'u8[4096]{0}', space=vmem, size = 0x1000, scoped, tag = 'input window, operand 0, single buffered']
    #allocation3 [shape = 's32[1]{0}', space=sflag, size = 0x4, scoped, tag = 'scoped memory for tpu_custom_call.1']
    #allocation4 [shape = 's32[1]{0}', space=sflag, size = 0x4, scoped, tag = 'scoped memory for tpu_custom_call.1']
    #allocation5 [shape = 'u8[4096]{0}', space=vmem, size = 0x1000, scoped, tag = 'input window, operand 1, single buffered']
    #allocation6 [shape = 's32[1]{0}', space=sflag, size = 0x4, scoped, tag = 'scoped memory for tpu_custom_call.1']
    #allocation7 [shape = 'u8[4096]{0}', space=vmem, size = 0x1000, scoped, tag = 'output window, operand 0, single buffered']
    %7 = vsyncpa [#allocation3], 0
    %8 = vsyncpa [#allocation6], 0
    %9 = vsyncpa [#allocation4], 0
    // Predicated region
    $region2: #{tpu_custom_call.1} parent=1 // pred_check
      _
    $region3: #{tpu_custom_call.1} parent=1 // pred_check_branch
      %11 = sbr.rel (0) target = $region5
    $region4: #{tpu_custom_call.1} parent=1 // pred_region
      %s13 = ssub.s32 128, 128
      %14 = vsyncadd [#allocation3], %s13
      %s16 = sshll.u32 [#allocation2], 4
      %s17 = int_to_ptr.vmem [resolvable:$true] %s16
      %19 = dma.hbm_to_vmem [thread:$0]  %s0, 128, %s17, [#allocation3]
    $region5: #{tpu_custom_call.1} parent=1 // pred_fallthru
      _
    // Predicated region
    $region6: #{tpu_custom_call.1} parent=1 // pred_check
      _
    $region7: #{tpu_custom_call.1} parent=1 // pred_check_branch
      %21 = sbr.rel (0) target = $region9
    $region8: #{tpu_custom_call.1} parent=1 // pred_region
      %s23 = ssub.s32 128, 128
      %24 = vsyncadd [#allocation6], %s23
      %s26 = sshll.u32 [#allocation5], 4
      %s27 = int_to_ptr.vmem [resolvable:$true] %s26
      %29 = dma.hbm_to_vmem [thread:$0]  %s1, 128, %s27, [#allocation6]
    $region9: #{tpu_custom_call.1} parent=1 // pred_fallthru
      _
    // Predicated region
    $region10: #{tpu_custom_call.1} parent=1 // pred_check
      _
    $region11: #{tpu_custom_call.1} parent=1 // pred_check_branch
      %31 = sbr.rel (0) target = $region13
    $region12: #{tpu_custom_call.1} parent=1 // pred_region
      %32 = dma.done [#allocation3], 128
    $region13: #{tpu_custom_call.1} parent=1 // pred_fallthru
      _
    // Predicated region
    $region14: #{tpu_custom_call.1} parent=1 // pred_check
      _
    $region15: #{tpu_custom_call.1} parent=1 // pred_check_branch
      %34 = sbr.rel (0) target = $region17
    $region16: #{tpu_custom_call.1} parent=1 // pred_region
      %35 = dma.done [#allocation6], 128
    $region17: #{tpu_custom_call.1} parent=1 // pred_fallthru
      _
    %v36 = vld [vmem:[#allocation2] sm:$0xff]
    %v37 = vld [vmem:[#allocation5] sm:$0xff]
    %v38 = vcvt.s32.f32 %v37
    %v39 = vsub.f32 %v36, %v38
    %v40 = vand.u32 2147483647, %v39
    %v41 = vsub.f32 0.0, %v40
    %v42 = vmul.f32 %v41, 1.442695
    %v43 = vpow.pop %v42
    %v44 = vadd.f32 %v43, 1.0
    %v45 = vlog2.pop %v44
    %v46 = vmul.f32 %v45, 0.6931472
    %v47 = vmul.f32 -0.5, %v43
    %v48 = vadd.f32 %v47, 1.0
    %v49 = vmul.f32 %v48, %v43
    %v50 = vand.u32 2147483647, %v43
    %vm51 = vcmp.lt.f32.partialorder %v50, 0.0004427343
    %v52 = vsel %vm51, %v49, %v46
    %v53 = vadd.f32 %v43, 1.0
    %v54 = vrcp.pop %v53
    %vm55 = vcmp.ge.f32.partialorder %v39, 0.0
    %v56 = vmul.f32 %v43, %v54
    %v57 = vsel %vm55, %v54, %v56
    %v58 = vmin.f32 %v39, 0.0
    %v59 = vsub.f32 %v58, %v52
    %vm60 = vcmp.gt.f32.partialorder %v39, 1.3862944
    %v61 = vsel %vm60, 1.0, %v38
    %v62 = vmul.f32 %v57, 2.0
    %v63 = vsub.f32 1.0, %v62
    %v64 = vmul.f32 %v61, %v63
    %v65 = vadd.f32 %v57, %v64
    %v66 = vmul.f32 %v65, %v65
    %v67 = vmul.f32 %v66, %v65
    %v68 = vsub.f32 1.0, %v61
    %v69 = vmul.f32 %v39, %v68
    %v70 = vsub.f32 %v69, %v59
    %v71 = vmul.f32 %v70, %v67
    %v72 = vadd.f32 %v71, 0.0
    %v73 = vadd.f32 %v72, 0.0
    %74 = vst [vmem:[#allocation7] sm:$0xff] %v73
    // Predicated region
    $region18: #{tpu_custom_call.1} parent=1 // pred_check
      _
    $region19: #{tpu_custom_call.1} parent=1 // pred_check_branch
      %76 = sbr.rel (0) target = $region21
    $region20: #{tpu_custom_call.1} parent=1 // pred_region
      %s78 = ssub.s32 128, 128
      %79 = vsyncadd [#allocation4], %s78
      %s81 = sshll.u32 [#allocation7], 4
      %s82 = int_to_ptr.vmem [resolvable:$true] %s81
      %84 = dma.vmem_to_hbm [thread:$0]  %s82, 128, %s2, [#allocation4]
    $region21: #{tpu_custom_call.1} parent=1 // pred_fallthru
      _
    // Predicated region
    $region22: #{tpu_custom_call.1} parent=1 // pred_check
      _
    $region23: #{tpu_custom_call.1} parent=1 // pred_check_branch
      %86 = sbr.rel (0) target = $region25
    $region24: #{tpu_custom_call.1} parent=1 // pred_region
      %87 = dma.done [#allocation4], 128
    $region25: #{tpu_custom_call.1} parent=1 // pred_fallthru
      _
    %88 = vsyncpa [#allocation3], 1
    %89 = vsyncpa [#allocation6], 1
    %90 = vsyncpa [#allocation4], 1

</llo_original>
